<compile_context>
chip_gen: v7x
topology: tpu7x:2x2x1
jax: 0.10.0
libtpu: 0.0.40
codegen_flags: <defaults>
</compile_context>

<pallas_src>
import functools
import math

import numpy as np

import jax
import jax.numpy as jnp
from jax import lax
from jax.experimental import pallas as pl
from jax.experimental.pallas import tpu as pltpu


SIGMA_REPGT = 0.9
EPS = 1e-6


def _round_up(x, m):
    return ((x + m - 1) // m) * m


# ---------------------------------------------------------------------------
# Fused kernel, grid=(B,):
#   per-image repgt + comgt statistics, plus (only on grid step 0) the aligned
#   -log(IoU) sum over pred2/target2.
#
#   out block: (1, 1, 128) f32; lanes
#     0: repgt_sum   1: repgt_count   2: comgt_sum   3: comgt_count
#     4: iou_sum (written only for b==0, zero elsewhere)
# ---------------------------------------------------------------------------
def _rep_loss_kernel(n_valid_ref, m_valid_ref,                 # scalar prefetch (SMEM)
                     assigned_ref, pred_ref, target_ref, pt2_ref,   # VMEM inputs
                     out_ref, *, n2):                          # VMEM output, static n2
    b = pl.program_id(0)
    n_valid = n_valid_ref[b]
    m_valid = m_valid_ref[b]

    m_pad = target_ref.shape[1]
    n_pad = pred_ref.shape[2]

    pred = pred_ref[0]            # (8, n_pad): rows 0..3 = x1,y1,x2,y2; 4..7 zero
    tgt = target_ref[0]           # (m_pad, 8): cols 0..3 coords; 4..7 zero
    assigned = assigned_ref[0]    # (1, n_pad) int32, -1 in padded lanes

    px1, py1, px2, py2 = pred[0:1, :], pred[1:2, :], pred[2:3, :], pred[3:4, :]
    tx1, ty1, tx2, ty2 = tgt[:, 0:1], tgt[:, 1:2], tgt[:, 2:3], tgt[:, 3:4]

    gt_ids = lax.broadcasted_iota(jnp.int32, (m_pad, n_pad), 0)   # gt idx / sublane
    pred_ids = lax.broadcasted_iota(jnp.int32, (1, n_pad), 1)     # pred idx / lane
    gt_row_ids = lax.broadcasted_iota(jnp.int32, (m_pad, 1), 0)
    valid2d = (pred_ids < n_valid) & (gt_row_ids < m_valid)       # (m_pad, n_pad)
    match = gt_ids == assigned                                    # (m_pad, n_pad)

    # ---------------- repgt: one (m_pad, n_pad) overlap pass ----------------
    iw = jnp.maximum(jnp.minimum(px2, tx2) - jnp.maximum(px1, tx1), 0.0)
    ih = jnp.maximum(jnp.minimum(py2, ty2) - jnp.maximum(py1, ty1), 0.0)
    ov = jnp.where(valid2d & jnp.logical_not(match), iw * ih, 0.0)

    mmax = jnp.max(ov, axis=0, keepdims=True)                     # (1, n_pad)
    valid = mmax > 0.0            # preds with 0 max-overlap are skipped (ref: continue)

    # first-occurrence argmax (matches strict '>' of the reference loop)
    is_max = (ov == mmax) & valid
    big = jnp.int32(m_pad)
    win = jnp.min(jnp.where(is_max, gt_ids, big), axis=0, keepdims=True)   # (1, n_pad)
    sel = gt_ids == win            # exactly one row per valid pred; none if win==m_pad

    g_area = (tx2 - tx1) * (ty2 - ty1)                            # (m_pad, 1)
    g_sel = jnp.sum(jnp.where(sel, g_area, 0.0), axis=0, keepdims=True)    # (1, n_pad)

    # intersection with the winning gt equals mmax, so IoG = mmax / G.
    iog = mmax / jnp.maximum(g_sel, EPS)
    smoothln = jnp.where(
        iog > SIGMA_REPGT,
        (iog - SIGMA_REPGT) / (1.0 - SIGMA_REPGT) - math.log(1.0 - SIGMA_REPGT),
        -jnp.log(jnp.maximum(1.0 - iog, 1e-6)),
    )
    repgt_sum = jnp.sum(jnp.where(valid, smoothln, 0.0))
    repgt_cnt = jnp.sum(valid.astype(jnp.float32))

    # ---------------- comgt: per-gt pred means on the MXU ----------------
    onehot = (match & valid2d).astype(jnp.float32)                # (m_pad, n_pad)
    counts = jnp.sum(onehot, axis=1, keepdims=True)               # (m_pad, 1)
    inv_counts = 1.0 / jnp.maximum(counts, 1.0)
    # (m_pad, n_pad) @ (8, n_pad)^T -> (m_pad, 8); cols 4..7 are zero by construction.
    sums = lax.dot_general(onehot, pred,
                           dimension_numbers=(((1,), (1,)), ((), ())),
                           preferred_element_type=jnp.float32)
    d = jnp.abs(tgt - sums * inv_counts)                          # (m_pad, 8)
    sl1 = jnp.where(d < 1.0, 0.5 * d * d, d - 0.5)
    per_gt = 0.25 * jnp.sum(sl1, axis=1, keepdims=True)           # SmoothL1 mean over 4 coords

    com_mask = counts > 1.0                                       # gts with >1 assigned preds
    comgt_sum = jnp.sum(jnp.where(com_mask, per_gt, 0.0))
    comgt_cnt = jnp.sum(com_mask.astype(jnp.float32))

    lane = lax.broadcasted_iota(jnp.int32, (1, 128), 1)
    row = jnp.where(lane == 0, repgt_sum,
          jnp.where(lane == 1, repgt_cnt,
          jnp.where(lane == 2, comgt_sum,
          jnp.where(lane == 3, comgt_cnt, 0.0))))
    out_ref[0] = row

    # ---------------- aligned -log(IoU) term (only once, on grid step 0) ----
    @pl.when(b == 0)
    def _():
        pt = pt2_ref[...]                          # (8, n2_pad): rows 0..3 pred2, 4..7 target2
        p, t = pt[0:4, :], pt[4:8, :]
        lt = jnp.maximum(p[0:2, :], t[0:2, :])     # 2-sublane slabs (x,y together)
        rb = jnp.minimum(p[2:4, :], t[2:4, :])
        wh = jnp.maximum(rb - lt, 0.0)
        overlap = wh[0:1, :] * wh[1:2, :]
        dp = p[2:4, :] - p[0:2, :]
        dt = t[2:4, :] - t[0:2, :]
        area_p = dp[0:1, :] * dp[1:2, :]
        area_t = dt[0:1, :] * dt[1:2, :]
        union = jnp.maximum(area_p + area_t - overlap, EPS)   # bbox_overlaps eps
        ious = jnp.maximum(overlap / union, EPS)              # .clamp(min=eps)
        loss2 = -jnp.log(ious)                                # mode='log'
        lane2 = lax.broadcasted_iota(jnp.int32, (1, loss2.shape[1]), 1)
        iou_sum = jnp.sum(jnp.where(lane2 < n2, loss2, 0.0))
        out_ref[0] = jnp.where(lane == 4, iou_sum, row)


# ---------------------------------------------------------------------------
# Host-side packing (single numpy pass, one H2D transfer per array) + wrapper
# ---------------------------------------------------------------------------
def rep_loss_forward(pred_list, pos_assigned_gt_inds, target_list, pred2, target2,
                     loss_weight=1.0):
    """RepLoss.forward with weight=None, avg_factor=None, reduction='mean',
    mode='log' (the module defaults)."""
    # Drop images whose assignment is None (host glue, as in the reference).
    items = [(p, a, t) for p, a, t in zip(pred_list, pos_assigned_gt_inds, target_list)
             if a is not None]

    B = max(len(items), 1)                       # keep >=1 image so the fused IoU term runs
    n_max = max([p.shape[0] for p, _, _ in items], default=0)
    m_max = max([t.shape[0] for _, _, t in items], default=0)
    n_pad = _round_up(max(n_max, 1), 128)
    m_pad = _round_up(max(m_max, 1), 8)

    preds = np.zeros((B, 8, n_pad), np.float32)        # rows 0..3 coords, 4..7 zero
    targets = np.zeros((B, m_pad, 8), np.float32)      # cols 0..3 coords, 4..7 zero
    assigned = np.full((B, 1, n_pad), -1, np.int32)
    n_valid = np.zeros((B,), np.int32)
    m_valid = np.zeros((B,), np.int32)
    for b, (p, a, t) in enumerate(items):
        n_i, m_i = int(p.shape[0]), int(t.shape[0])
        preds[b, 0:4, :n_i] = np.asarray(p, np.float32).T
        targets[b, :m_i, 0:4] = np.asarray(t, np.float32)
        assigned[b, 0, :n_i] = np.asarray(a, np.int32)
        n_valid[b] = n_i
        m_valid[b] = m_i

    n2 = int(pred2.shape[0])
    n2_pad = _round_up(max(n2, 1), 128)
    pt2 = np.zeros((8, n2_pad), np.float32)
    pt2[0:4, :n2] = np.asarray(pred2, np.float32).T
    pt2[4:8, :n2] = np.asarray(target2, np.float32).T

    out = pl.pallas_call(
        functools.partial(_rep_loss_kernel, n2=n2),
        out_shape=jax.ShapeDtypeStruct((B, 1, 128), jnp.float32),
        grid_spec=pltpu.PrefetchScalarGridSpec(
            num_scalar_prefetch=2,
            grid=(B,),
            in_specs=[
                pl.BlockSpec((1, 1, n_pad), lambda b, nv, mv: (b, 0, 0)),   # assigned
                pl.BlockSpec((1, 8, n_pad), lambda b, nv, mv: (b, 0, 0)),   # pred (8, n)
                pl.BlockSpec((1, m_pad, 8), lambda b, nv, mv: (b, 0, 0)),   # target (m, 8)
                pl.BlockSpec((8, n2_pad), lambda b, nv, mv: (0, 0)),        # pred2/target2 slab
            ],
            out_specs=pl.BlockSpec((1, 1, 128), lambda b, nv, mv: (b, 0, 0)),
        ),
        compiler_params=pltpu.CompilerParams(
            # shards images across both TCs on v7x; ~0 cost on single-TC v5e/v6e
            dimension_semantics=("parallel",),
        ),
    )(jnp.asarray(n_valid), jnp.asarray(m_valid),
      jnp.asarray(assigned), jnp.asarray(preds), jnp.asarray(targets), jnp.asarray(pt2))

    stats = jnp.sum(out[:, 0, :5], axis=0)   # [rep_sum, rep_cnt, com_sum, com_cnt, iou_sum]
    rep_sum, rep_cnt = stats[0], stats[1]
    com_sum, com_cnt = stats[2], stats[3]
    iou_sum = stats[4]

    loss = loss_weight * (iou_sum / jnp.float32(max(n2, 1)))   # guarded mean (n2==0 -> 0)
    rt = jnp.where(rep_cnt > 0, 10.0 * rep_sum / jnp.maximum(rep_cnt, 1.0), 0.0)
    ct = jnp.where(com_cnt > 0, 10.0 * com_sum / jnp.maximum(com_cnt, 1.0), 0.0)
    return loss + rt + ct


# ---------------------------------------------------------------------------
# Example
# ---------------------------------------------------------------------------
def _make_boxes(key, n):
    kxy, kwh = jax.random.split(key)
    xy = jax.random.uniform(kxy, (n, 2), jnp.float32, 0.0, 10.0)
    wh = jax.random.uniform(kwh, (n, 2), jnp.float32, 1.0, 5.0)
    return jnp.concatenate([xy, xy + wh], axis=-1)  # [x1, y1, x2, y2]


if __name__ == "__main__":
    key = jax.random.PRNGKey(0)
    keys = jax.random.split(key, 8)

    n_pred, n_gt, n2 = 8, 5, 16

    # list-of-images inputs (B = 2), as the original forward expects
    pred_list = [_make_boxes(keys[0], n_pred), _make_boxes(keys[1], n_pred)]
    target_list = [_make_boxes(keys[2], n_gt), _make_boxes(keys[3], n_gt)]
    pos_assigned_gt_inds = [
        jnp.array([0, 0, 1, 2, 2, 2, 3, 4], dtype=jnp.int32),
        jnp.array([1, 1, 1, 0, 3, 4, 4, 2], dtype=jnp.int32),
    ]

    # aligned bbox regression pairs for the IoU-loss term
    pred2 = _make_boxes(keys[4], n2)
    target2 = pred2 + 0.5 * jax.random.normal(keys[5], (n2, 4), jnp.float32)
    # keep targets valid boxes (x1<x2, y1<y2) like real gt boxes
    target2 = jnp.concatenate(
        [jnp.minimum(target2[:, :2], target2[:, 2:] - 0.1), target2[:, 2:]], axis=-1
    )

    out = rep_loss_forward(pred_list, pos_assigned_gt_inds, target_list, pred2, target2)
    out = jax.block_until_ready(out)
    print("KERNEL_OK")
</pallas_src>

<mosaic_0001>
module attributes {stable_mosaic.version = 11 : i64} {
  func.func @_rep_loss_kernel(%arg0: i32, %arg1: memref<2xi32, #tpu.memory_space<smem>>, %arg2: memref<2xi32, #tpu.memory_space<smem>>, %arg3: memref<1x1x128xi32, #tpu.memory_space<vmem>>, %arg4: memref<1x8x128xf32, #tpu.memory_space<vmem>>, %arg5: memref<1x8x8xf32, #tpu.memory_space<vmem>>, %arg6: memref<8x128xf32, #tpu.memory_space<vmem>>, %arg7: memref<1x1x128xf32, #tpu.memory_space<vmem>>) attributes {dimension_semantics = [#tpu.dimension_semantics<parallel>], iteration_bounds = array<i64: 2>, scalar_prefetch = 2 : i64, scratch_operands = 0 : i64, tpu.core_type = #tpu.core_type<tc>, window_params = [{transform_indices = @transform_0, window_bounds = array<i64: 1, 1, 128>}, {transform_indices = @transform_1, window_bounds = array<i64: 1, 8, 128>}, {transform_indices = @transform_2, window_bounds = array<i64: 1, 8, 8>}, {pipeline_mode = #tpu.pipeline_mode<synchronous>, transform_indices = @transform_3, window_bounds = array<i64: 8, 128>}, {transform_indices = @transform_4, window_bounds = array<i64: 1, 1, 128>}]} {
    %0 = arith.index_cast %arg0 : i32 to index
    %1 = memref.load %arg1[%0] : memref<2xi32, #tpu.memory_space<smem>>
    %2 = arith.index_cast %arg0 : i32 to index
    %3 = memref.load %arg2[%2] : memref<2xi32, #tpu.memory_space<smem>>
    %c0 = arith.constant 0 : index
    %c0_0 = arith.constant 0 : index
    %c0_1 = arith.constant 0 : index
    %4 = vector.load %arg4[%c0, %c0_0, %c0_1] : memref<1x8x128xf32, #tpu.memory_space<vmem>>, vector<1x8x128xf32>
    %5 = vector.shape_cast %4 : vector<1x8x128xf32> to vector<8x128xf32>
    %c0_2 = arith.constant 0 : index
    %c0_3 = arith.constant 0 : index
    %c0_4 = arith.constant 0 : index
    %6 = vector.load %arg5[%c0_2, %c0_3, %c0_4] : memref<1x8x8xf32, #tpu.memory_space<vmem>>, vector<1x8x8xf32>
    %7 = vector.shape_cast %6 : vector<1x8x8xf32> to vector<8x8xf32>
    %c0_5 = arith.constant 0 : index
    %c0_6 = arith.constant 0 : index
    %c0_7 = arith.constant 0 : index
    %8 = vector.load %arg3[%c0_5, %c0_6, %c0_7] : memref<1x1x128xi32, #tpu.memory_space<vmem>>, vector<1x1x128xi32>
    %9 = vector.shape_cast %8 : vector<1x1x128xi32> to vector<1x128xi32>
    %10 = vector.extract_strided_slice %5 {offsets = [0, 0], sizes = [1, 128], strides = [1, 1]} : vector<8x128xf32> to vector<1x128xf32>
    %11 = vector.extract_strided_slice %5 {offsets = [1, 0], sizes = [1, 128], strides = [1, 1]} : vector<8x128xf32> to vector<1x128xf32>
    %12 = vector.extract_strided_slice %5 {offsets = [2, 0], sizes = [1, 128], strides = [1, 1]} : vector<8x128xf32> to vector<1x128xf32>
    %13 = vector.extract_strided_slice %5 {offsets = [3, 0], sizes = [1, 128], strides = [1, 1]} : vector<8x128xf32> to vector<1x128xf32>
    %14 = vector.extract_strided_slice %7 {offsets = [0, 0], sizes = [8, 1], strides = [1, 1]} : vector<8x8xf32> to vector<8x1xf32>
    %15 = vector.extract_strided_slice %7 {offsets = [0, 1], sizes = [8, 1], strides = [1, 1]} : vector<8x8xf32> to vector<8x1xf32>
    %16 = vector.extract_strided_slice %7 {offsets = [0, 2], sizes = [8, 1], strides = [1, 1]} : vector<8x8xf32> to vector<8x1xf32>
    %17 = vector.extract_strided_slice %7 {offsets = [0, 3], sizes = [8, 1], strides = [1, 1]} : vector<8x8xf32> to vector<8x1xf32>
    %18 = tpu.iota {dimensions = array<i32: 0>} : vector<8x128xi32>
    %19 = tpu.iota {dimensions = array<i32: 1>} : vector<1x128xi32>
    %20 = tpu.iota {dimensions = array<i32: 0>} : vector<8x1xi32>
    %21 = vector.broadcast %1 : i32 to vector<1x128xi32>
    %22 = arith.cmpi slt, %19, %21 : vector<1x128xi32>
    %23 = vector.broadcast %3 : i32 to vector<8x1xi32>
    %24 = arith.cmpi slt, %20, %23 : vector<8x1xi32>
    %25 = vector.broadcast %22 : vector<1x128xi1> to vector<8x128xi1>
    %26 = vector.broadcast %24 : vector<8x1xi1> to vector<8x128xi1>
    %27 = arith.andi %25, %26 : vector<8x128xi1>
    %28 = vector.broadcast %9 : vector<1x128xi32> to vector<8x128xi32>
    %29 = arith.cmpi eq, %18, %28 : vector<8x128xi32>
    %30 = vector.broadcast %12 : vector<1x128xf32> to vector<8x128xf32>
    %31 = vector.broadcast %16 : vector<8x1xf32> to vector<8x128xf32>
    %32 = arith.minimumf %30, %31 : vector<8x128xf32>
    %33 = vector.broadcast %10 : vector<1x128xf32> to vector<8x128xf32>
    %34 = vector.broadcast %14 : vector<8x1xf32> to vector<8x128xf32>
    %35 = arith.maximumf %33, %34 : vector<8x128xf32>
    %36 = arith.subf %32, %35 : vector<8x128xf32>
    %cst = arith.constant 0.000000e+00 : f32
    %37 = vector.broadcast %cst : f32 to vector<8x128xf32>
    %38 = arith.maximumf %36, %37 : vector<8x128xf32>
    %39 = vector.broadcast %13 : vector<1x128xf32> to vector<8x128xf32>
    %40 = vector.broadcast %17 : vector<8x1xf32> to vector<8x128xf32>
    %41 = arith.minimumf %39, %40 : vector<8x128xf32>
    %42 = vector.broadcast %11 : vector<1x128xf32> to vector<8x128xf32>
    %43 = vector.broadcast %15 : vector<8x1xf32> to vector<8x128xf32>
    %44 = arith.maximumf %42, %43 : vector<8x128xf32>
    %45 = arith.subf %41, %44 : vector<8x128xf32>
    %cst_8 = arith.constant 0.000000e+00 : f32
    %46 = vector.broadcast %cst_8 : f32 to vector<8x128xf32>
    %47 = arith.maximumf %45, %46 : vector<8x128xf32>
    %cst_9 = arith.constant dense<true> : vector<8x128xi1>
    %48 = arith.xori %29, %cst_9 : vector<8x128xi1>
    %49 = arith.andi %27, %48 : vector<8x128xi1>
    %50 = arith.mulf %38, %47 : vector<8x128xf32>
    %cst_10 = arith.constant 0.000000e+00 : f32
    %51 = vector.broadcast %cst_10 : f32 to vector<8x128xf32>
    %52 = arith.select %49, %50, %51 : vector<8x128xi1>, vector<8x128xf32>
    %cst_11 = arith.constant dense<0xFF800000> : vector<128xf32>
    %53 = vector.multi_reduction <maximumf>, %52, %cst_11 [0] : vector<8x128xf32> to vector<128xf32>
    %54 = vector.shape_cast %53 : vector<128xf32> to vector<1x128xf32>
    %cst_12 = arith.constant 0.000000e+00 : f32
    %55 = vector.broadcast %cst_12 : f32 to vector<1x128xf32>
    %56 = arith.cmpf ogt, %54, %55 : vector<1x128xf32>
    %57 = vector.broadcast %54 : vector<1x128xf32> to vector<8x128xf32>
    %58 = arith.cmpf oeq, %52, %57 : vector<8x128xf32>
    %59 = vector.broadcast %56 : vector<1x128xi1> to vector<8x128xi1>
    %60 = arith.andi %58, %59 : vector<8x128xi1>
    %c8_i32 = arith.constant 8 : i32
    %61 = vector.broadcast %c8_i32 : i32 to vector<8x128xi32>
    %62 = arith.select %60, %18, %61 : vector<8x128xi1>, vector<8x128xi32>
    %cst_13 = arith.constant dense<2147483647> : vector<128xi32>
    %63 = vector.multi_reduction <minsi>, %62, %cst_13 [0] : vector<8x128xi32> to vector<128xi32>
    %64 = vector.shape_cast %63 : vector<128xi32> to vector<1x128xi32>
    %65 = vector.broadcast %64 : vector<1x128xi32> to vector<8x128xi32>
    %66 = arith.cmpi eq, %18, %65 : vector<8x128xi32>
    %67 = arith.subf %16, %14 : vector<8x1xf32>
    %68 = arith.subf %17, %15 : vector<8x1xf32>
    %69 = arith.mulf %67, %68 : vector<8x1xf32>
    %cst_14 = arith.constant 0.000000e+00 : f32
    %70 = vector.shape_cast %69 : vector<8x1xf32> to vector<8x1xf32>
    %71 = vector.broadcast %70 : vector<8x1xf32> to vector<8x128xf32>
    %72 = vector.broadcast %cst_14 : f32 to vector<8x128xf32>
    %73 = arith.select %66, %71, %72 : vector<8x128xi1>, vector<8x128xf32>
    %cst_15 = arith.constant dense<0.000000e+00> : vector<128xf32>
    %74 = vector.multi_reduction <add>, %73, %cst_15 [0] : vector<8x128xf32> to vector<128xf32>
    %75 = vector.shape_cast %74 : vector<128xf32> to vector<1x128xf32>
    %cst_16 = arith.constant 9.99999997E-7 : f32
    %76 = vector.broadcast %cst_16 : f32 to vector<1x128xf32>
    %77 = arith.maximumf %75, %76 : vector<1x128xf32>
    %78 = arith.divf %54, %77 : vector<1x128xf32>
    %cst_17 = arith.constant 0.899999976 : f32
    %79 = vector.broadcast %cst_17 : f32 to vector<1x128xf32>
    %80 = arith.cmpf ogt, %78, %79 : vector<1x128xf32>
    %cst_18 = arith.constant 0.899999976 : f32
    %81 = vector.broadcast %cst_18 : f32 to vector<1x128xf32>
    %82 = arith.subf %78, %81 : vector<1x128xf32>
    %cst_19 = arith.constant 1.000000e-01 : f32
    %83 = vector.broadcast %cst_19 : f32 to vector<1x128xf32>
    %84 = arith.divf %82, %83 : vector<1x128xf32>
    %cst_20 = arith.constant -2.30258512 : f32
    %85 = vector.broadcast %cst_20 : f32 to vector<1x128xf32>
    %86 = arith.subf %84, %85 : vector<1x128xf32>
    %cst_21 = arith.constant 1.000000e+00 : f32
    %87 = vector.broadcast %cst_21 : f32 to vector<1x128xf32>
    %88 = arith.subf %87, %78 : vector<1x128xf32>
    %cst_22 = arith.constant 9.99999997E-7 : f32
    %89 = vector.broadcast %cst_22 : f32 to vector<1x128xf32>
    %90 = arith.maximumf %88, %89 : vector<1x128xf32>
    %91 = math.log %90 : vector<1x128xf32>
    %cst_23 = arith.constant 0.000000e+00 : f32
    %92 = vector.broadcast %cst_23 : f32 to vector<1x128xf32>
    %93 = arith.subf %92, %91 : vector<1x128xf32>
    %94 = arith.select %80, %86, %93 : vector<1x128xi1>, vector<1x128xf32>
    %cst_24 = arith.constant 0.000000e+00 : f32
    %95 = vector.broadcast %cst_24 : f32 to vector<1x128xf32>
    %96 = arith.select %56, %94, %95 : vector<1x128xi1>, vector<1x128xf32>
    %97 = vector.shape_cast %96 : vector<1x128xf32> to vector<1x1x128xf32>
    %cst_25 = arith.constant dense<0.000000e+00> : vector<1xf32>
    %98 = vector.multi_reduction <add>, %97, %cst_25 [1, 2] : vector<1x1x128xf32> to vector<1xf32>
    %99 = vector.shape_cast %98 : vector<1xf32> to vector<1x1x1xf32>
    %100 = vector.extract %99[0, 0, 0] : f32 from vector<1x1x1xf32>
    %101 = arith.extui %56 : vector<1x128xi1> to vector<1x128xi32>
    %102 = arith.sitofp %101 : vector<1x128xi32> to vector<1x128xf32>
    %103 = vector.shape_cast %102 : vector<1x128xf32> to vector<1x1x128xf32>
    %cst_26 = arith.constant dense<0.000000e+00> : vector<1xf32>
    %104 = vector.multi_reduction <add>, %103, %cst_26 [1, 2] : vector<1x1x128xf32> to vector<1xf32>
    %105 = vector.shape_cast %104 : vector<1xf32> to vector<1x1x1xf32>
    %106 = vector.extract %105[0, 0, 0] : f32 from vector<1x1x1xf32>
    %107 = arith.andi %29, %27 : vector<8x128xi1>
    %108 = arith.extui %107 : vector<8x128xi1> to vector<8x128xi32>
    %109 = arith.sitofp %108 : vector<8x128xi32> to vector<8x128xf32>
    %cst_27 = arith.constant dense<0.000000e+00> : vector<8xf32>
    %110 = vector.multi_reduction <add>, %109, %cst_27 [1] : vector<8x128xf32> to vector<8xf32>
    %111 = vector.shape_cast %110 : vector<8xf32> to vector<8x1xf32>
    %cst_28 = arith.constant 1.000000e+00 : f32
    %112 = vector.broadcast %cst_28 : f32 to vector<8x1xf32>
    %113 = arith.maximumf %111, %112 : vector<8x1xf32>
    %cst_29 = arith.constant 1.000000e+00 : f32
    %114 = vector.broadcast %cst_29 : f32 to vector<8x1xf32>
    %115 = arith.divf %114, %113 : vector<8x1xf32>
    %cst_30 = arith.constant dense<0.000000e+00> : vector<8x8xf32>
    %116 = tpu.matmul %109, %5, %cst_30 {dimension_numbers = #tpu.dot_dimension_numbers<[1], [1], [0], [0], [0, 0, 1, 0], [], []>} : vector<8x128xf32>, vector<8x128xf32>, vector<8x8xf32> -> vector<8x8xf32>
    %117 = vector.broadcast %115 : vector<8x1xf32> to vector<8x8xf32>
    %118 = arith.mulf %116, %117 : vector<8x8xf32>
    %119 = arith.subf %7, %118 : vector<8x8xf32>
    %120 = math.absf %119 : vector<8x8xf32>
    %cst_31 = arith.constant 1.000000e+00 : f32
    %121 = vector.broadcast %cst_31 : f32 to vector<8x8xf32>
    %122 = arith.cmpf olt, %120, %121 : vector<8x8xf32>
    %cst_32 = arith.constant 5.000000e-01 : f32
    %123 = vector.broadcast %cst_32 : f32 to vector<8x8xf32>
    %124 = arith.mulf %123, %120 : vector<8x8xf32>
    %125 = arith.mulf %124, %120 : vector<8x8xf32>
    %cst_33 = arith.constant 5.000000e-01 : f32
    %126 = vector.broadcast %cst_33 : f32 to vector<8x8xf32>
    %127 = arith.subf %120, %126 : vector<8x8xf32>
    %128 = arith.select %122, %125, %127 : vector<8x8xi1>, vector<8x8xf32>
    %cst_34 = arith.constant dense<0.000000e+00> : vector<8xf32>
    %129 = vector.multi_reduction <add>, %128, %cst_34 [1] : vector<8x8xf32> to vector<8xf32>
    %130 = vector.shape_cast %129 : vector<8xf32> to vector<8x1xf32>
    %cst_35 = arith.constant 2.500000e-01 : f32
    %131 = vector.broadcast %cst_35 : f32 to vector<8x1xf32>
    %132 = arith.mulf %131, %130 : vector<8x1xf32>
    %cst_36 = arith.constant 1.000000e+00 : f32
    %133 = vector.broadcast %cst_36 : f32 to vector<8x1xf32>
    %134 = arith.cmpf ogt, %111, %133 : vector<8x1xf32>
    %cst_37 = arith.constant 0.000000e+00 : f32
    %135 = vector.broadcast %cst_37 : f32 to vector<8x1xf32>
    %136 = arith.select %134, %132, %135 : vector<8x1xi1>, vector<8x1xf32>
    %137 = vector.shape_cast %136 : vector<8x1xf32> to vector<1x8x1xf32>
    %cst_38 = arith.constant dense<0.000000e+00> : vector<1xf32>
    %138 = vector.multi_reduction <add>, %137, %cst_38 [1, 2] : vector<1x8x1xf32> to vector<1xf32>
    %139 = vector.shape_cast %138 : vector<1xf32> to vector<1x1x1xf32>
    %140 = vector.extract %139[0, 0, 0] : f32 from vector<1x1x1xf32>
    %141 = arith.extui %134 : vector<8x1xi1> to vector<8x1xi32>
    %142 = arith.sitofp %141 : vector<8x1xi32> to vector<8x1xf32>
    %143 = vector.shape_cast %142 : vector<8x1xf32> to vector<1x8x1xf32>
    %cst_39 = arith.constant dense<0.000000e+00> : vector<1xf32>
    %144 = vector.multi_reduction <add>, %143, %cst_39 [1, 2] : vector<1x8x1xf32> to vector<1xf32>
    %145 = vector.shape_cast %144 : vector<1xf32> to vector<1x1x1xf32>
    %146 = vector.extract %145[0, 0, 0] : f32 from vector<1x1x1xf32>
    %147 = tpu.iota {dimensions = array<i32: 1>} : vector<1x128xi32>
    %c0_i32 = arith.constant 0 : i32
    %148 = vector.broadcast %c0_i32 : i32 to vector<1x128xi32>
    %149 = arith.cmpi eq, %147, %148 : vector<1x128xi32>
    %c1_i32 = arith.constant 1 : i32
    %150 = vector.broadcast %c1_i32 : i32 to vector<1x128xi32>
    %151 = arith.cmpi eq, %147, %150 : vector<1x128xi32>
    %c2_i32 = arith.constant 2 : i32
    %152 = vector.broadcast %c2_i32 : i32 to vector<1x128xi32>
    %153 = arith.cmpi eq, %147, %152 : vector<1x128xi32>
    %c3_i32 = arith.constant 3 : i32
    %154 = vector.broadcast %c3_i32 : i32 to vector<1x128xi32>
    %155 = arith.cmpi eq, %147, %154 : vector<1x128xi32>
    %cst_40 = arith.constant 0.000000e+00 : f32
    %156 = vector.broadcast %146 : f32 to vector<1x128xf32>
    %157 = vector.broadcast %cst_40 : f32 to vector<1x128xf32>
    %158 = arith.select %155, %156, %157 : vector<1x128xi1>, vector<1x128xf32>
    %159 = vector.broadcast %140 : f32 to vector<1x128xf32>
    %160 = arith.select %153, %159, %158 : vector<1x128xi1>, vector<1x128xf32>
    %161 = vector.broadcast %106 : f32 to vector<1x128xf32>
    %162 = arith.select %151, %161, %160 : vector<1x128xi1>, vector<1x128xf32>
    %163 = vector.broadcast %100 : f32 to vector<1x128xf32>
    %164 = arith.select %149, %163, %162 : vector<1x128xi1>, vector<1x128xf32>
    %c0_41 = arith.constant 0 : index
    %c0_42 = arith.constant 0 : index
    %c0_43 = arith.constant 0 : index
    %165 = vector.load %arg7[%c0_41, %c0_42, %c0_43] : memref<1x1x128xf32, #tpu.memory_space<vmem>>, vector<1x1x128xf32>
    %166 = vector.shape_cast %165 : vector<1x1x128xf32> to vector<1x128xf32>
    %167 = vector.shape_cast %164 : vector<1x128xf32> to vector<1x1x128xf32>
    tpu.vector_store %arg7[%c0_41, %c0_42, %c0_43], %167 {strides = array<i32>} : memref<1x1x128xf32, #tpu.memory_space<vmem>>, vector<1x1x128xf32>,
    %c0_i32_44 = arith.constant 0 : i32
    %168 = arith.cmpi eq, %arg0, %c0_i32_44 : i32
    %169 = arith.extui %168 : i1 to i32
    %c0_i32_45 = arith.constant 0 : i32
    %170 = arith.cmpi ne, %169, %c0_i32_45 : i32
    scf.if %170 {
      %c0_46 = arith.constant 0 : index
      %c0_47 = arith.constant 0 : index
      %171 = vector.load %arg6[%c0_46, %c0_47] : memref<8x128xf32, #tpu.memory_space<vmem>>, vector<8x128xf32>
      %172 = vector.extract_strided_slice %171 {offsets = [0, 0], sizes = [4, 128], strides = [1, 1]} : vector<8x128xf32> to vector<4x128xf32>
      %173 = vector.extract_strided_slice %171 {offsets = [4, 0], sizes = [4, 128], strides = [1, 1]} : vector<8x128xf32> to vector<4x128xf32>
      %174 = vector.extract_strided_slice %172 {offsets = [0, 0], sizes = [2, 128], strides = [1, 1]} : vector<4x128xf32> to vector<2x128xf32>
      %175 = vector.extract_strided_slice %173 {offsets = [0, 0], sizes = [2, 128], strides = [1, 1]} : vector<4x128xf32> to vector<2x128xf32>
      %176 = arith.maximumf %174, %175 : vector<2x128xf32>
      %177 = vector.extract_strided_slice %172 {offsets = [2, 0], sizes = [2, 128], strides = [1, 1]} : vector<4x128xf32> to vector<2x128xf32>
      %178 = vector.extract_strided_slice %173 {offsets = [2, 0], sizes = [2, 128], strides = [1, 1]} : vector<4x128xf32> to vector<2x128xf32>
      %179 = arith.minimumf %177, %178 : vector<2x128xf32>
      %180 = arith.subf %179, %176 : vector<2x128xf32>
      %cst_48 = arith.constant 0.000000e+00 : f32
      %181 = vector.broadcast %cst_48 : f32 to vector<2x128xf32>
      %182 = arith.maximumf %180, %181 : vector<2x128xf32>
      %183 = vector.extract_strided_slice %182 {offsets = [0, 0], sizes = [1, 128], strides = [1, 1]} : vector<2x128xf32> to vector<1x128xf32>
      %184 = vector.extract_strided_slice %182 {offsets = [1, 0], sizes = [1, 128], strides = [1, 1]} : vector<2x128xf32> to vector<1x128xf32>
      %185 = arith.mulf %183, %184 : vector<1x128xf32>
      %186 = vector.extract_strided_slice %172 {offsets = [2, 0], sizes = [2, 128], strides = [1, 1]} : vector<4x128xf32> to vector<2x128xf32>
      %187 = vector.extract_strided_slice %172 {offsets = [0, 0], sizes = [2, 128], strides = [1, 1]} : vector<4x128xf32> to vector<2x128xf32>
      %188 = arith.subf %186, %187 : vector<2x128xf32>
      %189 = vector.extract_strided_slice %173 {offsets = [2, 0], sizes = [2, 128], strides = [1, 1]} : vector<4x128xf32> to vector<2x128xf32>
      %190 = vector.extract_strided_slice %173 {offsets = [0, 0], sizes = [2, 128], strides = [1, 1]} : vector<4x128xf32> to vector<2x128xf32>
      %191 = arith.subf %189, %190 : vector<2x128xf32>
      %192 = vector.extract_strided_slice %188 {offsets = [0, 0], sizes = [1, 128], strides = [1, 1]} : vector<2x128xf32> to vector<1x128xf32>
      %193 = vector.extract_strided_slice %188 {offsets = [1, 0], sizes = [1, 128], strides = [1, 1]} : vector<2x128xf32> to vector<1x128xf32>
      %194 = arith.mulf %192, %193 : vector<1x128xf32>
      %195 = vector.extract_strided_slice %191 {offsets = [0, 0], sizes = [1, 128], strides = [1, 1]} : vector<2x128xf32> to vector<1x128xf32>
      %196 = vector.extract_strided_slice %191 {offsets = [1, 0], sizes = [1, 128], strides = [1, 1]} : vector<2x128xf32> to vector<1x128xf32>
      %197 = arith.mulf %195, %196 : vector<1x128xf32>
      %198 = arith.addf %194, %197 : vector<1x128xf32>
      %199 = arith.subf %198, %185 : vector<1x128xf32>
      %cst_49 = arith.constant 9.99999997E-7 : f32
      %200 = vector.broadcast %cst_49 : f32 to vector<1x128xf32>
      %201 = arith.maximumf %199, %200 : vector<1x128xf32>
      %202 = arith.divf %185, %201 : vector<1x128xf32>
      %cst_50 = arith.constant 9.99999997E-7 : f32
      %203 = vector.broadcast %cst_50 : f32 to vector<1x128xf32>
      %204 = arith.maximumf %202, %203 : vector<1x128xf32>
      %205 = math.log %204 : vector<1x128xf32>
      %cst_51 = arith.constant 0.000000e+00 : f32
      %206 = vector.broadcast %cst_51 : f32 to vector<1x128xf32>
      %207 = arith.subf %206, %205 : vector<1x128xf32>
      %208 = tpu.iota {dimensions = array<i32: 1>} : vector<1x128xi32>
      %c16_i32 = arith.constant 16 : i32
      %209 = vector.broadcast %c16_i32 : i32 to vector<1x128xi32>
      %210 = arith.cmpi slt, %208, %209 : vector<1x128xi32>
      %cst_52 = arith.constant 0.000000e+00 : f32
      %211 = vector.broadcast %cst_52 : f32 to vector<1x128xf32>
      %212 = arith.select %210, %207, %211 : vector<1x128xi1>, vector<1x128xf32>
      %213 = vector.shape_cast %212 : vector<1x128xf32> to vector<1x1x128xf32>
      %cst_53 = arith.constant dense<0.000000e+00> : vector<1xf32>
      %214 = vector.multi_reduction <add>, %213, %cst_53 [1, 2] : vector<1x1x128xf32> to vector<1xf32>
      %215 = vector.shape_cast %214 : vector<1xf32> to vector<1x1x1xf32>
      %216 = vector.extract %215[0, 0, 0] : f32 from vector<1x1x1xf32>
      %c4_i32 = arith.constant 4 : i32
      %217 = vector.broadcast %c4_i32 : i32 to vector<1x128xi32>
      %218 = arith.cmpi eq, %147, %217 : vector<1x128xi32>
      %219 = vector.broadcast %216 : f32 to vector<1x128xf32>
      %220 = arith.select %218, %219, %164 : vector<1x128xi1>, vector<1x128xf32>
      %c0_54 = arith.constant 0 : index
      %c0_55 = arith.constant 0 : index
      %c0_56 = arith.constant 0 : index
      %221 = vector.load %arg7[%c0_54, %c0_55, %c0_56] : memref<1x1x128xf32, #tpu.memory_space<vmem>>, vector<1x1x128xf32>
      %222 = vector.shape_cast %221 : vector<1x1x128xf32> to vector<1x128xf32>
      %223 = vector.shape_cast %220 : vector<1x128xf32> to vector<1x1x128xf32>
      tpu.vector_store %arg7[%c0_54, %c0_55, %c0_56], %223 {strides = array<i32>} : memref<1x1x128xf32, #tpu.memory_space<vmem>>, vector<1x1x128xf32>,
    } else {
    }
    return
  }
  func.func @transform_0(%arg0: i32, %arg1: memref<2xi32, #tpu.memory_space<smem>>, %arg2: memref<2xi32, #tpu.memory_space<smem>>) -> (i32, i32, i32) {
    %c0_i32 = arith.constant 0 : i32
    %c0_i32_0 = arith.constant 0 : i32
    %c0_i32_1 = arith.constant 0 : i32
    return %arg0, %c0_i32, %c0_i32_0 : i32, i32, i32
  }
  func.func @transform_1(%arg0: i32, %arg1: memref<2xi32, #tpu.memory_space<smem>>, %arg2: memref<2xi32, #tpu.memory_space<smem>>) -> (i32, i32, i32) {
    %c0_i32 = arith.constant 0 : i32
    %c0_i32_0 = arith.constant 0 : i32
    %c0_i32_1 = arith.constant 0 : i32
    return %arg0, %c0_i32, %c0_i32_0 : i32, i32, i32
  }
  func.func @transform_2(%arg0: i32, %arg1: memref<2xi32, #tpu.memory_space<smem>>, %arg2: memref<2xi32, #tpu.memory_space<smem>>) -> (i32, i32, i32) {
    %c0_i32 = arith.constant 0 : i32
    %c0_i32_0 = arith.constant 0 : i32
    %c0_i32_1 = arith.constant 0 : i32
    return %arg0, %c0_i32, %c0_i32_0 : i32, i32, i32
  }
  func.func @transform_3(%arg0: i32, %arg1: memref<2xi32, #tpu.memory_space<smem>>, %arg2: memref<2xi32, #tpu.memory_space<smem>>) -> (i32, i32) {
    %c0_i32 = arith.constant 0 : i32
    %c0_i32_0 = arith.constant 0 : i32
    %c0_i32_1 = arith.constant 0 : i32
    return %c0_i32, %c0_i32_0 : i32, i32
  }
  func.func @transform_4(%arg0: i32, %arg1: memref<2xi32, #tpu.memory_space<smem>>, %arg2: memref<2xi32, #tpu.memory_space<smem>>) -> (i32, i32, i32) {
    %c0_i32 = arith.constant 0 : i32
    %c0_i32_0 = arith.constant 0 : i32
    %c0_i32_1 = arith.constant 0 : i32
    return %arg0, %c0_i32, %c0_i32_0 : i32, i32, i32
  }
}

</mosaic_0001>

<llo_original>
// kernel: tpu_custom_call.1
$region0: #{tpu_custom_call.1}
  #allocation0 [shape = 'u32[]', space=smem, size = 0x4, offset = 0x4, fixed_abs, tag = 'smem constant byte address 0x4 - core index']
  #allocation1 [shape = 'u32[144,128]{1,0:T(1,128)}', space=vmem, size = 0x12000, scoped, tag = 'internal scratch']
  #allocation2 [shape = 's32[1]{0}', space=sflag, size = 0x4, scoped, tag = 'scoped memory for tpu_custom_call.1']
  #allocation3 [shape = 'u8[512]{0}', space=smem, size = 0x200, scoped, tag = 'prefetched SMEM operand 0']
  #allocation4 [shape = 'u8[512]{0}', space=smem, size = 0x200, scoped, tag = 'prefetched SMEM operand 1']
  %s0 = inlined_call_operand.hbm [shape: s32[2], index: 0, kind: input, shape index: {}]
  %s1 = inlined_call_operand.vmem [shape: s32[2], index: 1, kind: input, shape index: {}]
  %s2 = inlined_call_operand.vmem [shape: s32[2,1,128], index: 2, kind: input, shape index: {}]
  %s3 = inlined_call_operand.hbm [shape: f32[2,8,128], index: 3, kind: input, shape index: {}]
  %s4 = inlined_call_operand.hbm [shape: f32[2,8,8], index: 4, kind: input, shape index: {}]
  %s5 = inlined_call_operand.vmem [shape: f32[8,128], index: 5, kind: input, shape index: {}]
  %s6 = inlined_call_operand.hbm [shape: f32[2,1,128], index: 6, kind: output, shape index: {}]
  %s7 = sld [smem:[#allocation0]]
  $region61: #{tpu_custom_call.1} parent=0
    _
  %s9 = ssub.s32 1, %s7
  %s10 = scalar_select 0, %s9, %s7
  %12 = dma.hbm_to_smem %s0, 16, [#allocation3], [#allocation2]
  %s13 = sshll.u32 %s1, 4
  %s14 = int_to_ptr.vmem [resolvable:$true] %s13
  %16 = dma.vmem_to_smem %s14, 16, [#allocation4], [#allocation2]
  %17 = dma.done [#allocation2], 32
  %18 = sfence
  $region1: #{tpu_custom_call.1} parent=0
    #allocation5 [shape = 'u8[8192]{0}', space=vmem, size = 0x2000, scoped, tag = 'input window, operand 3']
    #allocation6 [shape = 's32[2]{0}', space=sflag, size = 0x8, scoped, tag = 'scoped memory for tpu_custom_call.1']
    #allocation7 [shape = 's32[2]{0}', space=sflag, size = 0x8, scoped, tag = 'scoped memory for tpu_custom_call.1']
    #allocation8 [shape = 'u8[8192]{0}', space=vmem, size = 0x2000, scoped, tag = 'input window, operand 4']
    #allocation9 [shape = 's32[2]{0}', space=sflag, size = 0x8, scoped, tag = 'scoped memory for tpu_custom_call.1']
    #allocation10 [shape = 'u8[1024]{0}', space=vmem, size = 0x400, scoped, tag = 'output window, operand 0']
    %19 = vsyncpa [#allocation6], 0
    %s20 = scalar_lea.sflag [#allocation6], 1
    %21 = vsyncpa %s20, 0
    %22 = vsyncpa [#allocation9], 0
    %s23 = scalar_lea.sflag [#allocation9], 1
    %24 = vsyncpa %s23, 0
    %25 = vsyncpa [#allocation7], 0
    %s26 = scalar_lea.sflag [#allocation7], 1
    %27 = vsyncpa %s26, 0
    loop: start=0, step=1, limit=4
    $region2: #{tpu_custom_call.1} parent=1 // loop_pre_header
      _
    $region3: #{tpu_custom_call.1} parent=1 // loop_header
      %s29 = sphi 0, %s33
      %p30 = scmp.ge.s32.totalorder %s29, 4
      %s39 = sphi 0, %s41
      %s42 = sphi 0, %s39
      %s43 = sphi 0, %s42
      %s59 = sphi 0, %s43
      %s65 = sphi 0, %s67
      %s68 = sphi 0, %s65
      %s69 = sphi 0, %s68
      %s85 = sphi 0, %s69
      %s91 = sphi 0, %s93
      %s94 = sphi 0, %s91
      %s95 = sphi 0, %s94
      %s111 = sphi 0, %s95
      %s115 = sphi 0, %s115
      %s117 = sphi 0, %s115
      %s118 = sphi 0, %s117
      %s132 = sphi 0, %s118
      %s138 = sphi 0, %s140
      %s141 = sphi 0, %s138
      %s142 = sphi 0, %s141
      %s158 = sphi 0, %s142
    $region4: #{tpu_custom_call.1} parent=1 // loop_header_branch
      %32 = sbr.rel (%p30) target = $region8
    $region5: #{tpu_custom_call.1} parent=1 // loop_body
      %s34 = ssub.s32 %s29, 1
      %s35 = ssub.s32 %s29, 2
      %s36 = sadd.s32 %s29, 1
      %s37 = ssub.s32 %s29, %s36
      %p38 = scmp.eq.s32.totalorder %s37, 0
      %s40 = sadd.s32 %s39, 1
      %s41 = scalar_select %p38, %s39, %s40
      %p44 = pneg %p38
      %p45 = scmp.eq.s32.totalorder %s29, 1
      %p46 = por %p44, %p45
      %p47 = scmp.ne.s32.totalorder %s39, %s42
      %p48 = scmp.eq.s32.totalorder %s29, 0
      %p49 = por %p47, %p48
      %p50 = scmp.ne.s32.totalorder %s39, %s42
      %p51 = scmp.eq.s32.totalorder %s34, 1
      %p52 = por %p50, %p51
      %p53 = scmp.ne.s32.totalorder %s42, %s43
      %p54 = scmp.eq.s32.totalorder %s34, 0
      %p55 = por %p53, %p54
      %p56 = scmp.ne.s32.totalorder %s42, %s43
      %p57 = scmp.eq.s32.totalorder %s35, 1
      %p58 = por %p56, %p57
      %p60 = scmp.ne.s32.totalorder %s43, %s59
      %p61 = scmp.eq.s32.totalorder %s35, 0
      %p62 = por %p60, %p61
      %s63 = ssub.s32 %s29, %s36
      %p64 = scmp.eq.s32.totalorder %s63, 0
      %s66 = sadd.s32 %s65, 1
      %s67 = scalar_select %p64, %s65, %s66
      %p70 = pneg %p64
      %p71 = scmp.eq.s32.totalorder %s29, 1
      %p72 = por %p70, %p71
      %p73 = scmp.ne.s32.totalorder %s65, %s68
      %p74 = scmp.eq.s32.totalorder %s29, 0
      %p75 = por %p73, %p74
      %p76 = scmp.ne.s32.totalorder %s65, %s68
      %p77 = scmp.eq.s32.totalorder %s34, 1
      %p78 = por %p76, %p77
      %p79 = scmp.ne.s32.totalorder %s68, %s69
      %p80 = scmp.eq.s32.totalorder %s34, 0
      %p81 = por %p79, %p80
      %p82 = scmp.ne.s32.totalorder %s68, %s69
      %p83 = scmp.eq.s32.totalorder %s35, 1
      %p84 = por %p82, %p83
      %p86 = scmp.ne.s32.totalorder %s69, %s85
      %p87 = scmp.eq.s32.totalorder %s35, 0
      %p88 = por %p86, %p87
      %s89 = ssub.s32 %s29, %s36
      %p90 = scmp.eq.s32.totalorder %s89, 0
      %s92 = sadd.s32 %s91, 1
      %s93 = scalar_select %p90, %s91, %s92
      %p96 = pneg %p90
      %p97 = scmp.eq.s32.totalorder %s29, 1
      %p98 = por %p96, %p97
      %p99 = scmp.ne.s32.totalorder %s91, %s94
      %p100 = scmp.eq.s32.totalorder %s29, 0
      %p101 = por %p99, %p100
      %p102 = scmp.ne.s32.totalorder %s91, %s94
      %p103 = scmp.eq.s32.totalorder %s34, 1
      %p104 = por %p102, %p103
      %p105 = scmp.ne.s32.totalorder %s94, %s95
      %p106 = scmp.eq.s32.totalorder %s34, 0
      %p107 = por %p105, %p106
      %p108 = scmp.ne.s32.totalorder %s94, %s95
      %p109 = scmp.eq.s32.totalorder %s35, 1
      %p110 = por %p108, %p109
      %p112 = scmp.ne.s32.totalorder %s95, %s111
      %p113 = scmp.eq.s32.totalorder %s35, 0
      %p114 = por %p112, %p113
      %s116 = sadd.s32 %s115, 1
      %p119 = scmp.eq.s32.totalorder %s29, 1
      %p120 = scmp.ne.s32.totalorder %s115, %s117
      %p121 = scmp.eq.s32.totalorder %s29, 0
      %p122 = por %p120, %p121
      %p123 = scmp.ne.s32.totalorder %s115, %s117
      %p124 = scmp.eq.s32.totalorder %s34, 1
      %p125 = por %p123, %p124
      %p126 = scmp.ne.s32.totalorder %s117, %s118
      %p127 = scmp.eq.s32.totalorder %s34, 0
      %p128 = por %p126, %p127
      %p129 = scmp.ne.s32.totalorder %s117, %s118
      %p130 = scmp.eq.s32.totalorder %s35, 1
      %p131 = por %p129, %p130
      %p133 = scmp.ne.s32.totalorder %s118, %s132
      %p134 = scmp.eq.s32.totalorder %s35, 0
      %p135 = por %p133, %p134
      %s136 = ssub.s32 %s29, %s36
      %p137 = scmp.eq.s32.totalorder %s136, 0
      %s139 = sadd.s32 %s138, 1
      %s140 = scalar_select %p137, %s138, %s139
      %p143 = pneg %p137
      %p144 = scmp.eq.s32.totalorder %s29, 1
      %p145 = por %p143, %p144
      %p146 = scmp.ne.s32.totalorder %s138, %s141
      %p147 = scmp.eq.s32.totalorder %s29, 0
      %p148 = por %p146, %p147
      %p149 = scmp.ne.s32.totalorder %s138, %s141
      %p150 = scmp.eq.s32.totalorder %s34, 1
      %p151 = por %p149, %p150
      %p152 = scmp.ne.s32.totalorder %s141, %s142
      %p153 = scmp.eq.s32.totalorder %s34, 0
      %p154 = por %p152, %p153
      %p155 = scmp.ne.s32.totalorder %s141, %s142
      %p156 = scmp.eq.s32.totalorder %s35, 1
      %p157 = por %p155, %p156
      %p159 = scmp.ne.s32.totalorder %s142, %s158
      %p160 = scmp.eq.s32.totalorder %s35, 0
      %p161 = por %p159, %p160
      %p162 = scmp.le.s32.totalorder 1, %s29
      %p163 = scmp.lt.s32.totalorder %s29, 3
      %p164 = pnand %p162, %p163
      %p165 = pneg %p164
      // Predicated region
      $region9: #{tpu_custom_call.1} parent=5 // pred_check
        _
      $region10: #{tpu_custom_call.1} parent=5 // pred_check_branch
        %167 = sbr.rel (%p164) target = $region12
      $region11: #{tpu_custom_call.1} parent=5 // pred_region
        %s168 = ssub.s32 %s29, 1
        // Predicated region
        $region13: #{tpu_custom_call.1} parent=11 // pred_check
          %p169 = pneg %p128
        $region14: #{tpu_custom_call.1} parent=11 // pred_check_branch
          %171 = sbr.rel (%p169) target = $region16
        $region15: #{tpu_custom_call.1} parent=11 // pred_region
          _
        $region16: #{tpu_custom_call.1} parent=11 // pred_fallthru
          _
      $region12: #{tpu_custom_call.1} parent=5 // pred_fallthru
        _
      %p172 = scmp.lt.s32.totalorder %s29, 2
      // Predicated region
      $region17: #{tpu_custom_call.1} parent=5 // pred_check
        %p173 = pneg %p172
      $region18: #{tpu_custom_call.1} parent=5 // pred_check_branch
        %175 = sbr.rel (%p173) target = $region20
      $region19: #{tpu_custom_call.1} parent=5 // pred_region
        // Predicated region
        $region21: #{tpu_custom_call.1} parent=19 // pred_check
          %p176 = pneg %p49
        $region22: #{tpu_custom_call.1} parent=19 // pred_check_branch
          %178 = sbr.rel (%p176) target = $region24
        $region23: #{tpu_custom_call.1} parent=19 // pred_region
          %p179 = scmp.lt.s32.totalorder %s29, 1
          %s180 = scalar_select %p179, %s29, 1
          %s181 = scalar_lea.vmem %s2, %s180
        $region24: #{tpu_custom_call.1} parent=19 // pred_fallthru
          _
        // Predicated region
        $region25: #{tpu_custom_call.1} parent=19 // pred_check
          %p182 = pneg %p75
        $region26: #{tpu_custom_call.1} parent=19 // pred_check_branch
          %184 = sbr.rel (%p182) target = $region28
        $region27: #{tpu_custom_call.1} parent=19 // pred_region
          %s185 = sand.u32 %s65, 1
          %s186 = scalar_lea.sflag [#allocation6], %s185
          %s187 = sand.u32 %s65, 1
          %s188 = smul.addr %s187, 8
          %s189 = scalar_lea.vmem [#allocation5], %s188
          %s191 = ssub.s32 128, 128
          %192 = vsyncadd %s186, %s191
          %s193 = smul.addr %s29, 128
          %s194 = scalar_lea.hbm %s3, %s193
          %s196 = sshll.u32 %s189, 4
          %s197 = int_to_ptr.vmem [resolvable:$true] %s196
          %199 = dma.hbm_to_vmem [thread:$0]  %s194, 128, %s197, %s186
        $region28: #{tpu_custom_call.1} parent=19 // pred_fallthru
          _
        // Predicated region
        $region29: #{tpu_custom_call.1} parent=19 // pred_check
          %p200 = pneg %p101
        $region30: #{tpu_custom_call.1} parent=19 // pred_check_branch
          %202 = sbr.rel (%p200) target = $region32
        $region31: #{tpu_custom_call.1} parent=19 // pred_region
          %s203 = sand.u32 %s91, 1
          %s204 = scalar_lea.sflag [#allocation9], %s203
          %s205 = sand.u32 %s91, 1
          %s206 = smul.addr %s205, 8
          %s207 = scalar_lea.vmem [#allocation8], %s206
          %s209 = ssub.s32 128, 128
          %210 = vsyncadd %s204, %s209
          %s211 = smul.addr %s29, 128
          %s212 = scalar_lea.hbm %s4, %s211
          %s214 = sshll.u32 %s207, 4
          %s215 = int_to_ptr.vmem [resolvable:$true] %s214
          %217 = dma.hbm_to_vmem [thread:$0]  %s212, 128, %s215, %s204
        $region32: #{tpu_custom_call.1} parent=19 // pred_fallthru
          _
      $region20: #{tpu_custom_call.1} parent=5 // pred_fallthru
        _
      %p218 = scmp.le.s32.totalorder 1, %s29
      %p219 = scmp.lt.s32.totalorder %s29, 3
      %p220 = pnand %p218, %p219
      %p221 = pneg %p220
      // Predicated region
      $region33: #{tpu_custom_call.1} parent=5 // pred_check
        _
      $region34: #{tpu_custom_call.1} parent=5 // pred_check_branch
        %223 = sbr.rel (%p220) target = $region36
      $region35: #{tpu_custom_call.1} parent=5 // pred_region
        %s224 = ssub.s32 %s29, 1
        %s225 = sand.u32 %s68, 1
        %s226 = scalar_lea.sflag [#allocation6], %s225
        %s227 = sand.u32 %s68, 1
        %s228 = smul.addr %s227, 8
        %s229 = scalar_lea.vmem [#allocation5], %s228
        // Predicated region
        $region37: #{tpu_custom_call.1} parent=35 // pred_check
          %p230 = pneg %p81
        $region38: #{tpu_custom_call.1} parent=35 // pred_check_branch
          %232 = sbr.rel (%p230) target = $region40
        $region39: #{tpu_custom_call.1} parent=35 // pred_region
          %233 = dma.done %s226, 128
        $region40: #{tpu_custom_call.1} parent=35 // pred_fallthru
          _
        %s234 = sand.u32 %s94, 1
        %s235 = scalar_lea.sflag [#allocation9], %s234
        %s236 = sand.u32 %s94, 1
        %s237 = smul.addr %s236, 8
        %s238 = scalar_lea.vmem [#allocation8], %s237
        // Predicated region
        $region41: #{tpu_custom_call.1} parent=35 // pred_check
          %p239 = pneg %p107
        $region42: #{tpu_custom_call.1} parent=35 // pred_check_branch
          %241 = sbr.rel (%p239) target = $region44
        $region43: #{tpu_custom_call.1} parent=35 // pred_region
          %242 = dma.done %s235, 128
        $region44: #{tpu_custom_call.1} parent=35 // pred_fallthru
          _
        %p243 = scmp.lt.s32.totalorder %s34, 1
        %s244 = scalar_select %p243, %s34, 1
        %s245 = scalar_lea.vmem %s2, %s244
        %p246 = pneg %p55
        %p247 = pneg %p52
        %s248 = sand.u32 %s68, 1
        %s249 = scalar_lea.sflag [#allocation6], %s248
        %s250 = sand.u32 %s68, 1
        %s251 = smul.addr %s250, 8
        %s252 = scalar_lea.vmem [#allocation5], %s251
        %p253 = pneg %p81
        %p254 = pneg %p78
        %s255 = sand.u32 %s94, 1
        %s256 = scalar_lea.sflag [#allocation9], %s255
        %s257 = sand.u32 %s94, 1
        %s258 = smul.addr %s257, 8
        %s259 = scalar_lea.vmem [#allocation8], %s258
        %p260 = pneg %p107
        %p261 = pneg %p104
        %p262 = pneg %p128
        %p263 = pneg %p125
        %p264 = pneg %p154
        %p265 = pneg %p151
        %s266 = sand.u32 %s141, 1
        %s267 = scalar_lea.sflag [#allocation7], %s266
        %s268 = sand.u32 %s141, 1
        %s269 = scalar_lea.vmem [#allocation10], %s268
        %p270 = scmp.lt.s32.totalorder %s34, 1
        %s271 = scalar_select %p270, %s34, 1
        %s272 = scalar_lea.vmem %s2, %s271
        %s273 = sld [smem:[#allocation3 + %s34]]
        %s274 = sld [smem:[#allocation4 + %s34]]
        %v275 = vld [vmem:[%s229] sm:$0xff]
        %v276 = vld [vmem:[%s238] sm:$0xff]
        %v277 = vld [vmem:[%s272] sm:$0x1]
        %v278 = vlaneseq
        %v279 = vshrl.u32 %v278, 7
        %v280 = vlaneseq
        %v281 = vand.u32 %v280, 127
        %v282 = vstv %s273
        %vm283 = vcmp.lt.s32.totalorder %v281, %v282
        %v284 = vstv %s274
        %vm285 = vcmp.lt.s32.totalorder %v279, %v284
        %v286 = vsel %vm283, 1, 0
        %vm287 = vcmp.eq.s32.totalorder %v286, 1
        %v288 = vsel %vm285, 1, 0
        %vm289 = vcmp.eq.s32.totalorder %v288, 1
        %vm290 = vmand %vm287, %vm289
        %v291 = vlaneseq
        %v292 = vshrl.u32 %v291, 7
        %v293 = vsub.s32 0, %v292
        %v294 = vrot.slane %v277, %v293
        %vm295 = vcmp.eq.s32.totalorder %v279, %v294
        %v296 = vlaneseq
        %v297 = vshrl.u32 %v296, 7
        %v298 = vsub.s32 2, %v297
        %v299 = vrot.slane %v275, %v298
        %301 = vset.pattern.permute.xlu0 2
        %302 = vperm.xlu0 %301, %v276
        %v303 = vpop.permute.xlu0 %302
        %v305 = vmin.f32 %v299, %v303
        %v306 = vlaneseq
        %v307 = vshrl.u32 %v306, 7
        %v308 = vsub.s32 0, %v307
        %v309 = vrot.slane %v275, %v308
        %310 = vset.pattern.permute.xlu0 0
        %311 = vperm.xlu0 %310, %v276
        %v312 = vpop.permute.xlu0 %311
        %v314 = vmax.f32 %v309, %v312
        %v315 = vsub.f32 %v305, %v314
        %v316 = vmax.f32 %v315, 0.0
        %v317 = vlaneseq
        %v318 = vshrl.u32 %v317, 7
        %v319 = vsub.s32 3, %v318
        %v320 = vrot.slane %v275, %v319
        %321 = vset.pattern.permute.xlu0 3
        %322 = vperm.xlu0 %321, %v276
        %v323 = vpop.permute.xlu0 %322
        %v325 = vmin.f32 %v320, %v323
        %v326 = vlaneseq
        %v327 = vshrl.u32 %v326, 7
        %v328 = vsub.s32 1, %v327
        %v329 = vrot.slane %v275, %v328
        %330 = vset.pattern.permute.xlu0 1
        %331 = vperm.xlu0 %330, %v276
        %v332 = vpop.permute.xlu0 %331
        %v334 = vmax.f32 %v329, %v332
        %v335 = vsub.f32 %v325, %v334
        %v336 = vmax.f32 %v335, 0.0
        %vm337 = vmxor %vm295, 1
        %vm338 = vmand %vm290, %vm337
        %v339 = vmul.f32 %v316, %v336
        %v340 = vsel %vm338, %v339, 0.0
        %v341 = vrot.slane %v340, 4
        %v342 = vmax.f32 %v340, %v341
        %v343 = vrot.slane %v342, 2
        %v344 = vmax.f32 %v342, %v343
        %v345 = vrot.slane %v344, 1
        %v346 = vmax.f32 %v344, %v345
        %vm347 = vcmp.gt.f32.partialorder %v346, 0.0
        %vm348 = vcmp.eq.f32.partialorder %v340, %v346
        %v349 = vsel %vm347, 1, 0
        %vm350 = vcmp.eq.s32.totalorder %v349, 1
        %vm351 = vmand %vm348, %vm350
        %v352 = vsel %vm351, %v279, 8
        %v353 = vrot.slane %v352, 4
        %vm354 = vcmp.lt.s32.totalorder %v352, %v353
        %v355 = vsel %vm354, %v352, %v353
        %v356 = vrot.slane %v355, 2
        %vm357 = vcmp.lt.s32.totalorder %v355, %v356
        %v358 = vsel %vm357, %v355, %v356
        %v359 = vrot.slane %v358, 1
        %vm360 = vcmp.lt.s32.totalorder %v358, %v359
        %v361 = vsel %vm360, %v358, %v359
        %vm362 = vcmp.eq.s32.totalorder %v279, %v361
        %363 = vrot.lane.b32.xlu0 %v276, 2
        %v364 = vpop.permute.xlu0 %363
        %v366 = vsub.f32 %v276, %v364
        %368 = vrot.lane.b32.xlu0 %v366, 127
        %v369 = vpop.permute.xlu0 %368
        %v371 = vmul.f32 %v366, %v369
        %373 = vset.pattern.permute.xlu0 2
        %374 = vperm.xlu0 %373, %v371
        %v375 = vpop.permute.xlu0 %374
        %v377 = vsel %vm362, %v375, 0.0
        %v378 = vrot.slane %v377, 4
        %v379 = vadd.f32 %v377, %v378
        %v380 = vrot.slane %v379, 2
        %v381 = vadd.f32 %v379, %v380
        %v382 = vrot.slane %v381, 1
        %v383 = vadd.f32 %v381, %v382
        %v384 = vmax.f32 %v383, 1e-06
        %v385 = vrcp.pop %v384
        %v386 = vmul.f32 %v346, %v385
        %vm387 = vcmp.gt.f32.partialorder %v386, 0.9
        %v388 = vsub.f32 %v386, 0.9
        %v389 = vrcp.pop 0.1
        %v390 = vmul.f32 %v388, %v389
        %v391 = vsub.f32 %v390, -2.3025851
        %v392 = vsub.f32 1.0, %v386
        %v393 = vmax.f32 %v392, 1e-06
        %v394 = vlog2.pop %v393
        %v395 = vmul.f32 %v394, 0.6931472
        %v396 = vsub.f32 0.0, %v395
        %v397 = vsel %vm387, %v391, %v396
        %v398 = vsel %vm347, %v397, 0.0
        %vm399 = vcmask 1040384
        %v400 = vsel %vm399, %v398, 0.0
        %401 = vadd.xlane.f32.xlu0 %v400
        %v402 = vpop.xlane.xlu0 %401
        %v403 = vrot.slane %v402, 4
        %v404 = vadd.f32 %v402, %v403
        %v405 = vrot.slane %v404, 2
        %v406 = vadd.f32 %v404, %v405
        %v407 = vrot.slane %v406, 1
        %v408 = vadd.f32 %v406, %v407
        %s409 = vtos %v408
        %v410 = vcvt.s32.f32 %v349
        %v411 = vsel %vm399, %v410, 0.0
        %412 = vadd.xlane.f32.xlu0 %v411
        %v413 = vpop.xlane.xlu0 %412
        %v414 = vrot.slane %v413, 4
        %v415 = vadd.f32 %v413, %v414
        %v416 = vrot.slane %v415, 2
        %v417 = vadd.f32 %v415, %v416
        %v418 = vrot.slane %v417, 1
        %v419 = vadd.f32 %v417, %v418
        %s420 = vtos %v419
        %vm421 = vmand %vm295, %vm290
        %v422 = vsel %vm421, 1, 0
        %v423 = vcvt.s32.f32 %v422
        %424 = vadd.xlane.f32.xlu0 %v423
        %v425 = vpop.xlane.xlu0 %424
        %v426 = vmax.f32 %v425, 1.0
        %v427 = vrcp.pop %v426
        %v428 = vmul.f32 1.0, %v427
        %429 = vmatprep.subr.mxu0 0.0
        %430 = vmatpush1.xpose.msra.mxu0 %v275
        %431 = vmatprep.subr.mxu0 0.0
        %432 = vmatpush1.xpose.msra.mxu0 0.0
        %433 = vmatprep.subr.mxu0 0.0
        %434 = vmatpush1.xpose.msra.mxu0 0.0
        %435 = vmatprep.subr.mxu0 0.0
        %436 = vmatpush1.xpose.msra.mxu0 0.0
        %437 = vmatprep.subr.mxu0 0.0
        %438 = vmatpush1.xpose.msra.mxu0 0.0
        %439 = vmatprep.subr.mxu0 0.0
        %440 = vmatpush1.xpose.msra.mxu0 0.0
        %441 = vmatprep.subr.mxu0 0.0
        %442 = vmatpush1.xpose.msra.mxu0 0.0
        %443 = vmatprep.subr.mxu0 0.0
        %444 = vmatpush1.xpose.msra.mxu0 0.0
        %445 = vmatprep.subr.mxu0 0.0
        %446 = vmatpush1.xpose.msra.mxu0 0.0
        %447 = vmatprep.subr.mxu0 0.0
        %448 = vmatpush1.xpose.msra.mxu0 0.0
        %449 = vmatprep.subr.mxu0 0.0
        %450 = vmatpush1.xpose.msra.mxu0 0.0
        %451 = vmatprep.subr.mxu0 0.0
        %452 = vmatpush1.xpose.msra.mxu0 0.0
        %453 = vmatprep.subr.mxu0 0.0
        %454 = vmatpush1.xpose.msra.mxu0 0.0
        %455 = vmatprep.subr.mxu0 0.0
        %456 = vmatpush1.xpose.msra.mxu0 0.0
        %457 = vmatprep.subr.mxu0 0.0
        %458 = vmatpush1.xpose.msra.mxu0 0.0
        %459 = vmatprep.subr.mxu0 0.0
        %460 = vmatpush1.xpose.msra.mxu0 0.0
        %461 = vmatprep.subr.mxu0 0.0
        %462 = vmatpush1.xpose.msra.mxu0 0.0
        %463 = vmatprep.subr.mxu0 0.0
        %464 = vmatpush1.xpose.msra.mxu0 0.0
        %465 = vmatprep.subr.mxu0 0.0
        %466 = vmatpush1.xpose.msra.mxu0 0.0
        %467 = vmatprep.subr.mxu0 0.0
        %468 = vmatpush1.xpose.msra.mxu0 0.0
        %469 = vmatprep.subr.mxu0 0.0
        %470 = vmatpush1.xpose.msra.mxu0 0.0
        %471 = vmatprep.subr.mxu0 0.0
        %472 = vmatpush1.xpose.msra.mxu0 0.0
        %473 = vmatprep.subr.mxu0 0.0
        %474 = vmatpush1.xpose.msra.mxu0 0.0
        %475 = vmatprep.subr.mxu0 0.0
        %476 = vmatpush1.xpose.msra.mxu0 0.0
        %477 = vmatprep.subr.mxu0 0.0
        %478 = vmatpush1.xpose.msra.mxu0 0.0
        %479 = vmatprep.subr.mxu0 0.0
        %480 = vmatpush1.xpose.msra.mxu0 0.0
        %481 = vmatprep.subr.mxu0 0.0
        %482 = vmatpush1.xpose.msra.mxu0 0.0
        %483 = vmatprep.subr.mxu0 0.0
        %484 = vmatpush1.xpose.msra.mxu0 0.0
        %485 = vmatprep.subr.mxu0 0.0
        %486 = vmatpush1.xpose.msra.mxu0 0.0
        %487 = vmatprep.subr.mxu0 0.0
        %488 = vmatpush1.xpose.msra.mxu0 0.0
        %489 = vmatprep.subr.mxu0 0.0
        %490 = vmatpush1.xpose.msra.mxu0 0.0
        %491 = vmatprep.subr.mxu0 0.0
        %492 = vmatpush1.xpose.msra.mxu0 0.0
        %493 = vmatprep.mubr.f32.mxu0 0.0
        %494 = vmatmul.mubr.f32.gmra.mrb[0].mxu0 %v423
        %v495 = vpop.f32.mrb[0].mxu0
        %v496 = vadd.f32 0.0, %v495
        %v497 = vpop.f32.mrb[0].mxu0
        %498 = vdwg.mxu0
        %v499 = vmul.f32 %v496, %v428
        %v500 = vsub.f32 %v276, %v499
        %v501 = vand.u32 2147483647, %v500
        %vm502 = vcmp.lt.f32.partialorder %v501, 1.0
        %v503 = vmul.f32 %v501, 0.5
        %v504 = vmul.f32 %v503, %v501
        %v505 = vsub.f32 %v501, 0.5
        %v506 = vsel %vm502, %v504, %v505
        %vm507 = vcmask 64512
        %v508 = vsel %vm507, %v506, 0.0
        %509 = vadd.xlane.f32.xlu0 %v508
        %v510 = vpop.xlane.xlu0 %509
        %v511 = vmul.f32 %v510, 0.25
        %vm512 = vcmp.gt.f32.partialorder %v425, 1.0
        %v513 = vsel %vm512, %v511, 0.0
        %vm514 = vcmask 7168
        %v515 = vsel %vm514, %v513, 0.0
        %516 = vadd.xlane.f32.xlu0 %v515
        %v517 = vpop.xlane.xlu0 %516
        %v518 = vrot.slane %v517, 4
        %v519 = vadd.f32 %v517, %v518
        %v520 = vrot.slane %v519, 2
        %v521 = vadd.f32 %v519, %v520
        %v522 = vrot.slane %v521, 1
        %v523 = vadd.f32 %v521, %v522
        %s524 = vtos %v523
        %v525 = vsel %vm512, 1, 0
        %v526 = vcvt.s32.f32 %v525
        %v527 = vsel %vm514, %v526, 0.0
        %528 = vadd.xlane.f32.xlu0 %v527
        %v529 = vpop.xlane.xlu0 %528
        %v530 = vrot.slane %v529, 4
        %v531 = vadd.f32 %v529, %v530
        %v532 = vrot.slane %v531, 2
        %v533 = vadd.f32 %v531, %v532
        %v534 = vrot.slane %v533, 1
        %v535 = vadd.f32 %v533, %v534
        %s536 = vtos %v535
        %vm537 = vcmp.eq.s32.totalorder %v281, 0
        %vm538 = vcmp.eq.s32.totalorder %v281, 1
        %vm539 = vcmp.eq.s32.totalorder %v281, 2
        %vm540 = vcmp.eq.s32.totalorder %v281, 3
        %v541 = vstv %s536
        %v542 = vsel %vm540, %v541, 0.0
        %v543 = vstv %s524
        %v544 = vsel %vm539, %v543, %v542
        %v545 = vstv %s420
        %v546 = vsel %vm538, %v545, %v544
        %v547 = vstv %s409
        %v548 = vsel %vm537, %v547, %v546
        %549 = vst [vmem:[%s269] sm:$0x1] %v548
        %p550 = scmp.eq.s32.totalorder %s34, 0
        // Predicated region
        $region45: #{tpu_custom_call.1} parent=35 // pred_check
          %p551 = pneg %p550
        $region46: #{tpu_custom_call.1} parent=35 // pred_check_branch
          %553 = sbr.rel (%p551) target = $region48
        $region47: #{tpu_custom_call.1} parent=35 // pred_region
          %v554 = vld [vmem:[%s5] sm:$0xff]
          %v556 = vrot.slane %v554, 4
          %v558 = vmax.f32 %v554, %v556
          %v559 = vmin.f32 %v554, %v556
          %v561 = vrot.slane %v558, 6
          %v563 = vsub.f32 %v559, %v561
          %v564 = vmax.f32 %v563, 0.0
          %v566 = vrot.slane %v564, 1
          %v568 = vmul.f32 %v564, %v566
          %v569 = vrot.slane %v554, 6
          %v571 = vsub.f32 %v554, %v569
          %v573 = vrot.slane %v571, 1
          %v575 = vmul.f32 %v571, %v573
          %v577 = vrot.slane %v575, 4
          %v579 = vadd.f32 %v575, %v577
          %v580 = vsub.f32 %v579, %v568
          %v581 = vmax.f32 %v580, 1e-06
          %v582 = vrcp.pop %v581
          %v583 = vmul.f32 %v568, %v582
          %v584 = vmax.f32 %v583, 1e-06
          %v585 = vlog2.pop %v584
          %v586 = vmul.f32 %v585, 0.6931472
          %v587 = vsub.f32 0.0, %v586
          %vm588 = vcmp.lt.s32.totalorder %v281, 16
          %v589 = vsel %vm588, %v587, 0.0
          %v591 = vrot.slane %v589, 2
          %v593 = vsel %vm399, %v591, 0.0
          %594 = vadd.xlane.f32.xlu0 %v593
          %v595 = vpop.xlane.xlu0 %594
          %v596 = vrot.slane %v595, 4
          %v597 = vadd.f32 %v595, %v596
          %v598 = vrot.slane %v597, 2
          %v599 = vadd.f32 %v597, %v598
          %v600 = vrot.slane %v599, 1
          %v601 = vadd.f32 %v599, %v600
          %s602 = vtos %v601
          %vm603 = vcmp.eq.s32.totalorder %v281, 4
          %v604 = vstv %s602
          %v605 = vsel %vm603, %v604, %v548
          %606 = vst [vmem:[%s269] sm:$0x1] %v605
        $region48: #{tpu_custom_call.1} parent=35 // pred_fallthru
          _
        %s607 = sand.u32 %s141, 1
        %s608 = scalar_lea.sflag [#allocation7], %s607
        %s609 = sand.u32 %s141, 1
        %s610 = scalar_lea.vmem [#allocation10], %s609
        // Predicated region
        $region49: #{tpu_custom_call.1} parent=35 // pred_check
          %p611 = pneg %p151
        $region50: #{tpu_custom_call.1} parent=35 // pred_check_branch
          %613 = sbr.rel (%p611) target = $region52
        $region51: #{tpu_custom_call.1} parent=35 // pred_region
          %s615 = ssub.s32 16, 16
          %616 = vsyncadd %s608, %s615
          %s617 = smul.addr %s34, 16
          %s618 = scalar_lea.hbm %s6, %s617
          %s620 = sshll.u32 %s610, 4
          %s621 = int_to_ptr.vmem [resolvable:$true] %s620
          %623 = dma.vmem_to_hbm [thread:$0]  %s621, 16, %s618, %s608
        $region52: #{tpu_custom_call.1} parent=35 // pred_fallthru
          _
      $region36: #{tpu_custom_call.1} parent=5 // pred_fallthru
        _
      %p624 = scmp.le.s32.totalorder 2, %s29
      // Predicated region
      $region53: #{tpu_custom_call.1} parent=5 // pred_check
        %p625 = pneg %p624
      $region54: #{tpu_custom_call.1} parent=5 // pred_check_branch
        %627 = sbr.rel (%p625) target = $region56
      $region55: #{tpu_custom_call.1} parent=5 // pred_region
        %s628 = ssub.s32 %s29, 2
        // Predicated region
        $region57: #{tpu_custom_call.1} parent=55 // pred_check
          %p629 = pneg %p157
        $region58: #{tpu_custom_call.1} parent=55 // pred_check_branch
          %631 = sbr.rel (%p629) target = $region60
        $region59: #{tpu_custom_call.1} parent=55 // pred_region
          %s632 = sand.u32 %s142, 1
          %s633 = scalar_lea.sflag [#allocation7], %s632
          %s634 = sand.u32 %s142, 1
          %s635 = scalar_lea.vmem [#allocation10], %s634
          %636 = dma.done %s633, 16
        $region60: #{tpu_custom_call.1} parent=55 // pred_fallthru
          _
      $region56: #{tpu_custom_call.1} parent=5 // pred_fallthru
        _
    $region6: #{tpu_custom_call.1} parent=1 // loop_footer
      %s33 = sadd.s32 1, %s29
    $region7: #{tpu_custom_call.1} parent=1 // loop_footer_branch
      %28 = sbr.rel target = $region3
    $region8: #{tpu_custom_call.1} parent=1 // loop_exit
      _
    %637 = vsyncpa [#allocation6], 1
    %s638 = scalar_lea.sflag [#allocation6], 1
    %639 = vsyncpa %s638, 1
    %640 = vsyncpa [#allocation9], 1
    %s641 = scalar_lea.sflag [#allocation9], 1
    %642 = vsyncpa %s641, 1
    %643 = vsyncpa [#allocation7], 1
    %s644 = scalar_lea.sflag [#allocation7], 1
    %645 = vsyncpa %s644, 1

</llo_original>
